<compile_context>
chip_gen: v5e
topology: v5e:2x2
jax: 0.10.0
libtpu: 0.0.40
codegen_flags: <defaults>
</compile_context>

<pallas_src>
import math

import jax
import jax.numpy as jnp
from jax.experimental import pallas as pl
from jax.experimental.pallas import tpu as pltpu


# ----------------------------------------------------------------------------- helpers
def _round_up(v, m):
    return (v + m - 1) // m * m


def _cdiv(a, b):
    return -(-a // b)


def _vmem_capacity_bytes():
    try:
        return int(pltpu.get_tpu_info().vmem_capacity_bytes)
    except Exception:
        return 64 * 1024 * 1024  # conservative (v7x-sized) fallback


def _num_tensorcores():
    try:
        kind = jax.devices()[0].device_kind.lower()
    except Exception:
        return 1
    return 2 if ("v7" in kind or "v4" in kind or "v5p" in kind) else 1


# ----------------------------------------------------------------------------- kernels
def _rff_resident_kernel(x_ref, w1_ref, b1_ref, w2_ref, b2_ref, o_ref):
    # x_ref: (tm, d_pad)   w1_ref: (d_pad, h_pad)   b1_ref: (1, h_pad)
    # w2_ref: (h_pad, d_pad)   b2_ref: (1, d_pad)   o_ref: (tm, d_pad)
    x = x_ref[...].astype(w1_ref.dtype)
    h = jnp.dot(x, w1_ref[...], preferred_element_type=jnp.float32) + b1_ref[...]
    h = jnp.maximum(h, 0.0)
    o = jnp.dot(h.astype(w2_ref.dtype), w2_ref[...],
                preferred_element_type=jnp.float32) + b2_ref[...]
    o_ref[...] = jnp.maximum(o, 0.0).astype(o_ref.dtype)


def _rff_ktiled_kernel(x_ref, w1_ref, b1_ref, w2_ref, b2_ref, o_ref, acc_ref):
    # Hidden-dim streaming: W1 column-block (d_pad, th), W2 row-block (th, d_pad),
    # f32 accumulator (tm, d_pad).  Correct because ReLU acts per hidden column.
    k = pl.program_id(1)

    @pl.when(k == 0)
    def _():
        acc_ref[...] = jnp.zeros_like(acc_ref)

    x = x_ref[...].astype(w1_ref.dtype)
    h = jnp.dot(x, w1_ref[...], preferred_element_type=jnp.float32) + b1_ref[...]
    h = jnp.maximum(h, 0.0)
    acc_ref[...] += jnp.dot(h.astype(w2_ref.dtype), w2_ref[...],
                            preferred_element_type=jnp.float32)

    @pl.when(k == pl.num_programs(1) - 1)
    def _():
        o_ref[...] = jnp.maximum(acc_ref[...] + b2_ref[...], 0.0).astype(o_ref.dtype)


# ----------------------------------------------------------------------------- wrapper
def rff_forward(x, w1, b1, w2, b2, *, tm=512, mxu_dtype=None, hidden_tile=None):
    """x: [b, n, d].  w1: [d, 4d], b1: [4d], w2: [4d, d], b2: [d].  Returns [b, n, d].

    mxu_dtype: optional dtype (e.g. jnp.bfloat16) for the matmul operands;
               accumulation stays in f32.
    hidden_tile: force the hidden-dim (k) tiled path with this hidden tile.
    """
    b, n, d = x.shape
    hdim = 4 * d
    assert w1.shape == (d, hdim) and b1.shape == (hdim,)
    assert w2.shape == (hdim, d) and b2.shape == (d,)

    dtype = x.dtype
    x_isz = jnp.dtype(dtype).itemsize
    w_dtype = jnp.dtype(mxu_dtype) if mxu_dtype is not None else jnp.dtype(w1.dtype)
    w_isz = w_dtype.itemsize
    b_isz = jnp.dtype(b1.dtype).itemsize
    sub = 16 if x_isz == 2 else 8            # sublane multiple (bf16 packs 2x)

    M = b * n
    x2 = x.reshape(M, d)

    d_pad = _round_up(d, 128)                # lane-dense feature dims
    h128 = _round_up(hdim, 128)

    # ---- hardware-derived budgets & row-tile choice --------------------------
    vmem_cap = _vmem_capacity_bytes()
    budget = int(0.85 * vmem_cap)
    num_tc = _num_tensorcores()

    tm = max(sub, _round_up(min(tm, M), sub))
    if num_tc == 2 and M > sub:
        steps = _cdiv(M, tm)
        if steps == 1:
            tm = max(sub, _round_up(_cdiv(M, 2), sub))       # keep both TCs busy
        elif steps % 2 == 1:
            tm = max(sub, _round_up(_cdiv(M, steps + 1), sub))  # even step count

    def resident_bytes(t):
        return (4 * t * d_pad * x_isz                       # x + out tiles, 2 buffers each
                + 2 * d_pad * h128 * w_isz                  # W1 + W2 (single-buffered)
                + (h128 + d_pad) * b_isz                    # biases
                + t * h128 * 4 + t * d_pad * 4)             # f32 intermediates

    def ktiled_bytes(t, th_):
        return (4 * t * d_pad * x_isz
                + 4 * d_pad * th_ * w_isz                   # streamed W1/W2 blocks, 2 buffers
                + (2 * th_ + d_pad) * b_isz
                + t * d_pad * 4                             # f32 accumulator scratch
                + t * th_ * 4)                              # f32 hidden block

    mode, th = None, None
    if hidden_tile is None:
        for t in [tm] + [c for c in (256, 128, sub) if c < tm]:
            t = max(sub, _round_up(t, sub))
            if resident_bytes(t) <= budget:
                mode, tm = "resident", t
                break
    if mode is None:
        mode = "ktiled"
        tm = max(sub, _round_up(min(tm, 256), sub))
        if hidden_tile is not None:
            th = min(_round_up(hidden_tile, 128), h128)
        else:
            for cand in (2048, 1024, 512, 256, 128):
                if cand <= h128 and ktiled_bytes(tm, cand) <= budget:
                    th = cand
                    break
            else:
                for t in (128, 64, 32, sub):
                    t = max(sub, _round_up(min(t, tm), sub))
                    if ktiled_bytes(t, 128) <= budget:
                        tm, th = t, 128
                        break
                else:
                    raise ValueError(
                        "RFF weights + tiles do not fit the VMEM budget "
                        f"({budget} bytes) even at tm={sub}, hidden_tile=128; "
                        f"d={d} is too large for this kernel.")

    h_tiled = h128 if mode == "resident" else _round_up(hdim, th)

    # ---- pad only when needed (zero padding is mathematically inert here) ----
    x2p = x2 if d_pad == d else jnp.pad(x2, ((0, 0), (0, d_pad - d)))
    w1p = w1 if (d_pad == d and h_tiled == hdim) else jnp.pad(
        w1, ((0, d_pad - d), (0, h_tiled - hdim)))
    b1p = (b1 if h_tiled == hdim else jnp.pad(b1, (0, h_tiled - hdim))).reshape(1, h_tiled)
    w2p = w2 if (d_pad == d and h_tiled == hdim) else jnp.pad(
        w2, ((0, h_tiled - hdim), (0, d_pad - d)))
    b2p = (b2 if d_pad == d else jnp.pad(b2, (0, d_pad - d))).reshape(1, d_pad)

    if mxu_dtype is not None:                 # bf16 MXU path: cast weights only,
        w1p = w1p.astype(mxu_dtype)           # keep biases / accumulation in f32.
        w2p = w2p.astype(mxu_dtype)

    gm = _cdiv(M, tm)                         # ragged last row tile handled in-kernel
    footprint = resident_bytes(tm) if mode == "resident" else ktiled_bytes(tm, th)
    vmem_limit = int(min(0.9 * vmem_cap, max(footprint * 1.4, 32 * 1024 * 1024)))

    cost = pl.CostEstimate(
        flops=2 * 2 * M * d * hdim,           # two matmuls
        transcendentals=0,
        bytes_accessed=(2 * M * d * x_isz
                        + 2 * d_pad * h_tiled * w_isz
                        + (h_tiled + d_pad) * b_isz),
    )

    if mode == "resident":
        out2 = pl.pallas_call(
            _rff_resident_kernel,
            out_shape=jax.ShapeDtypeStruct((M, d_pad), dtype),
            grid_spec=pltpu.PrefetchScalarGridSpec(
                num_scalar_prefetch=0,
                grid=(gm,),
                in_specs=[
                    pl.BlockSpec((tm, d_pad), lambda i: (i, 0)),        # x row tile
                    pl.BlockSpec((d_pad, h_tiled), lambda i: (0, 0),
                                 pipeline_mode=pl.Buffered(1)),         # W1 (resident)
                    pl.BlockSpec((1, h_tiled), lambda i: (0, 0),
                                 pipeline_mode=pl.Buffered(1)),         # b1
                    pl.BlockSpec((h_tiled, d_pad), lambda i: (0, 0),
                                 pipeline_mode=pl.Buffered(1)),         # W2 (resident)
                    pl.BlockSpec((1, d_pad), lambda i: (0, 0),
                                 pipeline_mode=pl.Buffered(1)),         # b2
                ],
                out_specs=pl.BlockSpec((tm, d_pad), lambda i: (i, 0)),
            ),
            compiler_params=pltpu.CompilerParams(
                dimension_semantics=("parallel",),
                vmem_limit_bytes=vmem_limit),
            cost_estimate=cost,
        )(x2p, w1p, b1p, w2p, b2p)
    else:
        gk = h_tiled // th
        out2 = pl.pallas_call(
            _rff_ktiled_kernel,
            out_shape=jax.ShapeDtypeStruct((M, d_pad), dtype),
            grid_spec=pltpu.PrefetchScalarGridSpec(
                num_scalar_prefetch=0,
                grid=(gm, gk),
                in_specs=[
                    pl.BlockSpec((tm, d_pad), lambda i, k: (i, 0)),     # x row tile
                    pl.BlockSpec((d_pad, th), lambda i, k: (0, k)),     # W1 col block
                    pl.BlockSpec((1, th), lambda i, k: (0, k)),         # b1 block
                    pl.BlockSpec((th, d_pad), lambda i, k: (k, 0)),     # W2 row block
                    pl.BlockSpec((1, d_pad), lambda i, k: (0, 0),
                                 pipeline_mode=pl.Buffered(1)),         # b2 (resident)
                ],
                out_specs=pl.BlockSpec((tm, d_pad), lambda i, k: (i, 0)),
                scratch_shapes=[pltpu.VMEM((tm, d_pad), jnp.float32)],
            ),
            compiler_params=pltpu.CompilerParams(
                dimension_semantics=("parallel", "arbitrary"),
                vmem_limit_bytes=vmem_limit),
            cost_estimate=cost,
        )(x2p, w1p, b1p, w2p, b2p)

    out2 = out2 if d_pad == d else out2[:, :d]
    return out2.reshape(b, n, d)


# ----------------------------------------------------------------------------- reference / init
def init_rff_params(key, d, dtype=jnp.float32):
    """Deterministic init mimicking torch.nn.Linear defaults
    (uniform(-1/sqrt(fan_in), 1/sqrt(fan_in))); weights stored as [in, out]."""
    d4 = 4 * d
    k1, k2, k3, k4 = jax.random.split(key, 4)
    bound1 = 1.0 / math.sqrt(d)
    bound2 = 1.0 / math.sqrt(d4)
    w1 = jax.random.uniform(k1, (d, d4), dtype, minval=-bound1, maxval=bound1)
    b1 = jax.random.uniform(k2, (d4,), dtype, minval=-bound1, maxval=bound1)
    w2 = jax.random.uniform(k3, (d4, d), dtype, minval=-bound2, maxval=bound2)
    b2 = jax.random.uniform(k4, (d,), dtype, minval=-bound2, maxval=bound2)
    return w1, b1, w2, b2


def rff_reference(x, w1, b1, w2, b2):
    h = jnp.maximum(jnp.einsum("bnd,df->bnf", x, w1) + b1, 0.0)
    return jnp.maximum(jnp.einsum("bnf,fd->bnd", h, w2) + b2, 0.0)


if __name__ == "__main__":
    key = jax.random.PRNGKey(0)

    # --- 1. primary small config matching the module spec: x [b, n, d] -------
    kx, kp = jax.random.split(key)
    b, n, d = 2, 8, 32
    x = jax.random.normal(kx, (b, n, d), dtype=jnp.float32)
    w1, b1, w2, b2 = init_rff_params(kp, d)

    out = jax.block_until_ready(rff_forward(x, w1, b1, w2, b2))
    ref = rff_reference(x, w1, b1, w2, b2)
    assert out.shape == (b, n, d)
    assert jnp.allclose(out, ref, atol=1e-4, rtol=1e-4), "mismatch (small, f32)"

    # --- 2. ragged M + ragged d + multi-step row grid (resident-weight path) -
    kx2, kp2 = jax.random.split(jax.random.PRNGKey(1))
    b2_, n2_, d2_ = 2, 300, 48          # M=600 (ragged vs tm), d=48 -> d_pad=128
    x2 = jax.random.normal(kx2, (b2_, n2_, d2_), dtype=jnp.float32)
    p2 = init_rff_params(kp2, d2_)

    out2 = jax.block_until_ready(rff_forward(x2, *p2))
    ref2 = rff_reference(x2, *p2)
    assert out2.shape == (b2_, n2_, d2_)
    assert jnp.allclose(out2, ref2, atol=1e-4, rtol=1e-4), "mismatch (tiled, f32)"

    # --- 3. forced hidden-dim (k) tiling path (exact in f32) -----------------
    out3 = jax.block_until_ready(rff_forward(x2, *p2, hidden_tile=128))
    assert jnp.allclose(out3, ref2, atol=1e-4, rtol=1e-4), "mismatch (k-tiled, f32)"

    # --- 4. bf16 MXU path (weights bf16, f32 accumulation; looser tolerance) -
    out4 = jax.block_until_ready(rff_forward(x2, *p2, mxu_dtype=jnp.bfloat16))
    assert jnp.allclose(out4, ref2, atol=5e-2, rtol=5e-2), "mismatch (bf16 MXU)"

    print("KERNEL_OK")
</pallas_src>

<mosaic_0001>
module attributes {stable_mosaic.version = 11 : i64} {
  func.func @_rff_resident_kernel(%arg0: i32, %arg1: memref<16x128xf32, #tpu.memory_space<vmem>>, %arg2: memref<128x128xf32, #tpu.memory_space<vmem>>, %arg3: memref<1x128xf32, #tpu.memory_space<vmem>>, %arg4: memref<128x128xf32, #tpu.memory_space<vmem>>, %arg5: memref<1x128xf32, #tpu.memory_space<vmem>>, %arg6: memref<16x128xf32, #tpu.memory_space<vmem>>) attributes {dimension_semantics = [#tpu.dimension_semantics<parallel>], iteration_bounds = array<i64: 1>, scalar_prefetch = 0 : i64, scratch_operands = 0 : i64, tpu.core_type = #tpu.core_type<tc>, window_params = [{transform_indices = @transform_0, window_bounds = array<i64: 16, 128>}, {pipeline_mode = #tpu.pipeline_mode<synchronous>, transform_indices = @transform_1, window_bounds = array<i64: 128, 128>}, {pipeline_mode = #tpu.pipeline_mode<synchronous>, transform_indices = @transform_2, window_bounds = array<i64: 1, 128>}, {pipeline_mode = #tpu.pipeline_mode<synchronous>, transform_indices = @transform_3, window_bounds = array<i64: 128, 128>}, {pipeline_mode = #tpu.pipeline_mode<synchronous>, transform_indices = @transform_4, window_bounds = array<i64: 1, 128>}, {transform_indices = @transform_5, window_bounds = array<i64: 16, 128>}]} {
    %c0 = arith.constant 0 : index
    %c0_0 = arith.constant 0 : index
    %0 = vector.load %arg1[%c0, %c0_0] : memref<16x128xf32, #tpu.memory_space<vmem>>, vector<16x128xf32>
    %c0_1 = arith.constant 0 : index
    %c0_2 = arith.constant 0 : index
    %1 = vector.load %arg2[%c0_1, %c0_2] : memref<128x128xf32, #tpu.memory_space<vmem>>, vector<128x128xf32>
    %cst = arith.constant dense<0.000000e+00> : vector<16x128xf32>
    %2 = tpu.matmul %0, %1, %cst {dimension_numbers = #tpu.dot_dimension_numbers<[1], [0], [0], [1], [0, 0, 1, 1], [], []>} : vector<16x128xf32>, vector<128x128xf32>, vector<16x128xf32> -> vector<16x128xf32>
    %c0_3 = arith.constant 0 : index
    %c0_4 = arith.constant 0 : index
    %3 = vector.load %arg3[%c0_3, %c0_4] : memref<1x128xf32, #tpu.memory_space<vmem>>, vector<1x128xf32>
    %4 = vector.broadcast %3 : vector<1x128xf32> to vector<16x128xf32>
    %5 = arith.addf %2, %4 : vector<16x128xf32>
    %cst_5 = arith.constant 0.000000e+00 : f32
    %6 = vector.broadcast %cst_5 : f32 to vector<16x128xf32>
    %7 = arith.maximumf %5, %6 : vector<16x128xf32>
    %c0_6 = arith.constant 0 : index
    %c0_7 = arith.constant 0 : index
    %8 = vector.load %arg4[%c0_6, %c0_7] : memref<128x128xf32, #tpu.memory_space<vmem>>, vector<128x128xf32>
    %cst_8 = arith.constant dense<0.000000e+00> : vector<16x128xf32>
    %9 = tpu.matmul %7, %8, %cst_8 {dimension_numbers = #tpu.dot_dimension_numbers<[1], [0], [0], [1], [0, 0, 1, 1], [], []>} : vector<16x128xf32>, vector<128x128xf32>, vector<16x128xf32> -> vector<16x128xf32>
    %c0_9 = arith.constant 0 : index
    %c0_10 = arith.constant 0 : index
    %10 = vector.load %arg5[%c0_9, %c0_10] : memref<1x128xf32, #tpu.memory_space<vmem>>, vector<1x128xf32>
    %11 = vector.broadcast %10 : vector<1x128xf32> to vector<16x128xf32>
    %12 = arith.addf %9, %11 : vector<16x128xf32>
    %cst_11 = arith.constant 0.000000e+00 : f32
    %13 = vector.broadcast %cst_11 : f32 to vector<16x128xf32>
    %14 = arith.maximumf %12, %13 : vector<16x128xf32>
    %c0_12 = arith.constant 0 : index
    %c0_13 = arith.constant 0 : index
    %15 = vector.load %arg6[%c0_12, %c0_13] : memref<16x128xf32, #tpu.memory_space<vmem>>, vector<16x128xf32>
    tpu.vector_store %arg6[%c0_12, %c0_13], %14 {strides = array<i32>} : memref<16x128xf32, #tpu.memory_space<vmem>>, vector<16x128xf32>,
    return
  }
  func.func @transform_0(%arg0: i32) -> (i32, i32) {
    %c0_i32 = arith.constant 0 : i32
    %c0_i32_0 = arith.constant 0 : i32
    return %arg0, %c0_i32 : i32, i32
  }
  func.func @transform_1(%arg0: i32) -> (i32, i32) {
    %c0_i32 = arith.constant 0 : i32
    %c0_i32_0 = arith.constant 0 : i32
    %c0_i32_1 = arith.constant 0 : i32
    return %c0_i32, %c0_i32_0 : i32, i32
  }
  func.func @transform_2(%arg0: i32) -> (i32, i32) {
    %c0_i32 = arith.constant 0 : i32
    %c0_i32_0 = arith.constant 0 : i32
    %c0_i32_1 = arith.constant 0 : i32
    return %c0_i32, %c0_i32_0 : i32, i32
  }
  func.func @transform_3(%arg0: i32) -> (i32, i32) {
    %c0_i32 = arith.constant 0 : i32
    %c0_i32_0 = arith.constant 0 : i32
    %c0_i32_1 = arith.constant 0 : i32
    return %c0_i32, %c0_i32_0 : i32, i32
  }
  func.func @transform_4(%arg0: i32) -> (i32, i32) {
    %c0_i32 = arith.constant 0 : i32
    %c0_i32_0 = arith.constant 0 : i32
    %c0_i32_1 = arith.constant 0 : i32
    return %c0_i32, %c0_i32_0 : i32, i32
  }
  func.func @transform_5(%arg0: i32) -> (i32, i32) {
    %c0_i32 = arith.constant 0 : i32
    %c0_i32_0 = arith.constant 0 : i32
    return %arg0, %c0_i32 : i32, i32
  }
}

</mosaic_0001>

<llo_original>
// kernel: tpu_custom_call.1
$region0: #{tpu_custom_call.1}
  #allocation0 [shape = 'u32[]', space=smem, size = 0x4, offset = 0x4, fixed_abs, tag = 'smem constant byte address 0x4 - core index']
  #allocation1 [shape = 'u32[72,128]{1,0:T(1,128)}', space=vmem, size = 0x9000, scoped, tag = 'internal scratch']
  %s0 = inlined_call_operand.hbm [shape: f32[16,128], index: 0, kind: input, shape index: {}]
  %s1 = inlined_call_operand.hbm [shape: f32[128,128], index: 1, kind: input, shape index: {}]
  %s2 = inlined_call_operand.vmem [shape: f32[1,128], index: 2, kind: input, shape index: {}]
  %s3 = inlined_call_operand.hbm [shape: f32[128,128], index: 3, kind: input, shape index: {}]
  %s4 = inlined_call_operand.vmem [shape: f32[1,128], index: 4, kind: input, shape index: {}]
  %s5 = inlined_call_operand.hbm [shape: f32[16,128], index: 5, kind: output, shape index: {}]
  %s6 = sld [smem:[#allocation0]]
  $region42: #{tpu_custom_call.1} parent=0
    _
  %s8 = ssub.s32 1, %s6
  %s9 = scalar_select 0, %s8, %s6
  $region1: #{tpu_custom_call.1} parent=0
    #allocation2 [shape = 'u8[8192]{0}', space=vmem, size = 0x2000, scoped, tag = 'input window, operand 0, single buffered']
    #allocation3 [shape = 's32[1]{0}', space=sflag, size = 0x4, scoped, tag = 'scoped memory for tpu_custom_call.1']
    #allocation4 [shape = 's32[1]{0}', space=sflag, size = 0x4, scoped, tag = 'scoped memory for tpu_custom_call.1']
    #allocation5 [shape = 'u8[65536]{0}', space=vmem, size = 0x10000, scoped, tag = 'input window, operand 1, single buffered']
    #allocation6 [shape = 's32[1]{0}', space=sflag, size = 0x4, scoped, tag = 'scoped memory for tpu_custom_call.1']
    #allocation7 [shape = 'u8[65536]{0}', space=vmem, size = 0x10000, scoped, tag = 'input window, operand 3, single buffered']
    #allocation8 [shape = 'u8[8192]{0}', space=vmem, size = 0x2000, scoped, tag = 'output window, operand 0, single buffered']
    %10 = vsyncpa [#allocation3], 0
    %11 = vsyncpa [#allocation6], 0
    %12 = vsyncpa [#allocation4], 0
    // Predicated region
    $region2: #{tpu_custom_call.1} parent=1 // pred_check
      _
    $region3: #{tpu_custom_call.1} parent=1 // pred_check_branch
      %14 = sbr.rel (0) target = $region5
    $region4: #{tpu_custom_call.1} parent=1 // pred_region
      %16 = vsyncadd [#allocation3], 0
      %s17 = sshll.u32 %s0, 4
      %s18 = int_to_ptr.hbm [resolvable:$true] %s17
      %s19 = sshll.u32 [#allocation2], 4
      %s20 = int_to_ptr.vmem [resolvable:$true] %s19
      %25 = dma.hbm_to_vmem [thread:$0]  %s18, 256, %s20, [#allocation3], 128, 128, 8
    $region5: #{tpu_custom_call.1} parent=1 // pred_fallthru
      _
    // Predicated region
    $region6: #{tpu_custom_call.1} parent=1 // pred_check
      _
    $region7: #{tpu_custom_call.1} parent=1 // pred_check_branch
      %27 = sbr.rel (0) target = $region9
    $region8: #{tpu_custom_call.1} parent=1 // pred_region
      %29 = vsyncadd [#allocation6], 0
      %s30 = sshll.u32 %s1, 4
      %s31 = int_to_ptr.hbm [resolvable:$true] %s30
      %s32 = sshll.u32 [#allocation5], 4
      %s33 = int_to_ptr.vmem [resolvable:$true] %s32
      %38 = dma.hbm_to_vmem [thread:$0]  %s31, 2048, %s33, [#allocation6], 128, 128, 8
    $region9: #{tpu_custom_call.1} parent=1 // pred_fallthru
      _
    // Predicated region
    $region10: #{tpu_custom_call.1} parent=1 // pred_check
      _
    $region11: #{tpu_custom_call.1} parent=1 // pred_check_branch
      %40 = sbr.rel (0) target = $region13
    $region12: #{tpu_custom_call.1} parent=1 // pred_region
      _
    $region13: #{tpu_custom_call.1} parent=1 // pred_fallthru
      _
    // Predicated region
    $region14: #{tpu_custom_call.1} parent=1 // pred_check
      _
    $region15: #{tpu_custom_call.1} parent=1 // pred_check_branch
      %42 = sbr.rel (0) target = $region17
    $region16: #{tpu_custom_call.1} parent=1 // pred_region
      %44 = vsyncadd [#allocation6], 0
      %s45 = sshll.u32 %s3, 4
      %s46 = int_to_ptr.hbm [resolvable:$true] %s45
      %s47 = sshll.u32 [#allocation7], 4
      %s48 = int_to_ptr.vmem [resolvable:$true] %s47
      %53 = dma.hbm_to_vmem [thread:$0]  %s46, 2048, %s48, [#allocation6], 128, 128, 8
    $region17: #{tpu_custom_call.1} parent=1 // pred_fallthru
      _
    // Predicated region
    $region18: #{tpu_custom_call.1} parent=1 // pred_check
      _
    $region19: #{tpu_custom_call.1} parent=1 // pred_check_branch
      %55 = sbr.rel (0) target = $region21
    $region20: #{tpu_custom_call.1} parent=1 // pred_region
      _
    $region21: #{tpu_custom_call.1} parent=1 // pred_fallthru
      _
    // Predicated region
    $region22: #{tpu_custom_call.1} parent=1 // pred_check
      _
    $region23: #{tpu_custom_call.1} parent=1 // pred_check_branch
      %57 = sbr.rel (0) target = $region25
    $region24: #{tpu_custom_call.1} parent=1 // pred_region
      %59 = dma.done [#allocation3], 256
    $region25: #{tpu_custom_call.1} parent=1 // pred_fallthru
      _
    // Predicated region
    $region26: #{tpu_custom_call.1} parent=1 // pred_check
      _
    $region27: #{tpu_custom_call.1} parent=1 // pred_check_branch
      %61 = sbr.rel (0) target = $region29
    $region28: #{tpu_custom_call.1} parent=1 // pred_region
      %63 = dma.done [#allocation6], 2048
    $region29: #{tpu_custom_call.1} parent=1 // pred_fallthru
      _
    // Predicated region
    $region30: #{tpu_custom_call.1} parent=1 // pred_check
      _
    $region31: #{tpu_custom_call.1} parent=1 // pred_check_branch
      %65 = sbr.rel (0) target = $region33
    $region32: #{tpu_custom_call.1} parent=1 // pred_region
      %67 = dma.done [#allocation6], 2048
    $region33: #{tpu_custom_call.1} parent=1 // pred_fallthru
      _
    %v68 = vld [vmem:[#allocation2] sm:$0xff]
    %v69 = vld [vmem:[#allocation2 + $0x8] sm:$0xff]
    %v70 = vld [vmem:[#allocation5] sm:$0xff]
    %v71 = vld [vmem:[#allocation5 + $0x8] sm:$0xff]
    %v72 = vld [vmem:[#allocation5 + $0x10] sm:$0xff]
    %v73 = vld [vmem:[#allocation5 + $0x18] sm:$0xff]
    %v74 = vld [vmem:[#allocation5 + $0x20] sm:$0xff]
    %v75 = vld [vmem:[#allocation5 + $0x28] sm:$0xff]
    %v76 = vld [vmem:[#allocation5 + $0x30] sm:$0xff]
    %v77 = vld [vmem:[#allocation5 + $0x38] sm:$0xff]
    %v78 = vld [vmem:[#allocation5 + $0x40] sm:$0xff]
    %v79 = vld [vmem:[#allocation5 + $0x48] sm:$0xff]
    %v80 = vld [vmem:[#allocation5 + $0x50] sm:$0xff]
    %v81 = vld [vmem:[#allocation5 + $0x58] sm:$0xff]
    %v82 = vld [vmem:[#allocation5 + $0x60] sm:$0xff]
    %v83 = vld [vmem:[#allocation5 + $0x68] sm:$0xff]
    %v84 = vld [vmem:[#allocation5 + $0x70] sm:$0xff]
    %v85 = vld [vmem:[#allocation5 + $0x78] sm:$0xff]
    %v86 = vld [vmem:[%s2] sm:$0x1]
    %v88 = vperm.slane %v86, 0
    %90 = vmatpush.msra.mxu0 %v85
    %91 = vmatpush.msra.mxu0 %v84
    %92 = vmatpush.msra.mxu0 %v83
    %93 = vmatpush.msra.mxu0 %v82
    %94 = vmatpush.msra.mxu0 %v81
    %95 = vmatpush.msra.mxu0 %v80
    %96 = vmatpush.msra.mxu0 %v79
    %97 = vmatpush.msra.mxu0 %v78
    %98 = vmatpush.msra.mxu0 %v77
    %99 = vmatpush.msra.mxu0 %v76
    %100 = vmatpush.msra.mxu0 %v75
    %101 = vmatpush.msra.mxu0 %v74
    %102 = vmatpush.msra.mxu0 %v73
    %103 = vmatpush.msra.mxu0 %v72
    %104 = vmatpush.msra.mxu0 %v71
    %105 = vmatpush.msra.mxu0 %v70
    %106 = vmatmul.f32.gmra.mxu0 %v68
    %v107 = vpop.f32.mrf.mxu0
    %v108 = vadd.f32 %v88, %v107
    %109 = vmatmul.f32.gmra.mxu0 %v69
    %v110 = vpop.f32.mrf.mxu0
    %v111 = vadd.f32 %v88, %v110
    %112 = vdwg.mxu0
    %v113 = vmax.f32 %v108, 0.0
    %v114 = vmax.f32 %v111, 0.0
    %v115 = vld [vmem:[#allocation7] sm:$0xff]
    %v116 = vld [vmem:[#allocation7 + $0x8] sm:$0xff]
    %v117 = vld [vmem:[#allocation7 + $0x10] sm:$0xff]
    %v118 = vld [vmem:[#allocation7 + $0x18] sm:$0xff]
    %v119 = vld [vmem:[#allocation7 + $0x20] sm:$0xff]
    %v120 = vld [vmem:[#allocation7 + $0x28] sm:$0xff]
    %v121 = vld [vmem:[#allocation7 + $0x30] sm:$0xff]
    %v122 = vld [vmem:[#allocation7 + $0x38] sm:$0xff]
    %v123 = vld [vmem:[#allocation7 + $0x40] sm:$0xff]
    %v124 = vld [vmem:[#allocation7 + $0x48] sm:$0xff]
    %v125 = vld [vmem:[#allocation7 + $0x50] sm:$0xff]
    %v126 = vld [vmem:[#allocation7 + $0x58] sm:$0xff]
    %v127 = vld [vmem:[#allocation7 + $0x60] sm:$0xff]
    %v128 = vld [vmem:[#allocation7 + $0x68] sm:$0xff]
    %v129 = vld [vmem:[#allocation7 + $0x70] sm:$0xff]
    %v130 = vld [vmem:[#allocation7 + $0x78] sm:$0xff]
    %v131 = vld [vmem:[%s4] sm:$0x1]
    %v133 = vperm.slane %v131, 0
    %135 = vmatpush.msra.mxu0 %v130
    %136 = vmatpush.msra.mxu0 %v129
    %137 = vmatpush.msra.mxu0 %v128
    %138 = vmatpush.msra.mxu0 %v127
    %139 = vmatpush.msra.mxu0 %v126
    %140 = vmatpush.msra.mxu0 %v125
    %141 = vmatpush.msra.mxu0 %v124
    %142 = vmatpush.msra.mxu0 %v123
    %143 = vmatpush.msra.mxu0 %v122
    %144 = vmatpush.msra.mxu0 %v121
    %145 = vmatpush.msra.mxu0 %v120
    %146 = vmatpush.msra.mxu0 %v119
    %147 = vmatpush.msra.mxu0 %v118
    %148 = vmatpush.msra.mxu0 %v117
    %149 = vmatpush.msra.mxu0 %v116
    %150 = vmatpush.msra.mxu0 %v115
    %151 = vmatmul.f32.gmra.mxu0 %v113
    %v152 = vpop.f32.mrf.mxu0
    %v153 = vadd.f32 %v133, %v152
    %154 = vmatmul.f32.gmra.mxu0 %v114
    %v155 = vpop.f32.mrf.mxu0
    %v156 = vadd.f32 %v133, %v155
    %157 = vdwg.mxu0
    %v158 = vmax.f32 %v153, 0.0
    %v159 = vmax.f32 %v156, 0.0
    %160 = vst [vmem:[#allocation8] sm:$0xff] %v158
    %161 = vst [vmem:[#allocation8 + $0x8] sm:$0xff] %v159
    // Predicated region
    $region34: #{tpu_custom_call.1} parent=1 // pred_check
      _
    $region35: #{tpu_custom_call.1} parent=1 // pred_check_branch
      %163 = sbr.rel (0) target = $region37
    $region36: #{tpu_custom_call.1} parent=1 // pred_region
      %165 = vsyncadd [#allocation4], 0
      %s166 = sshll.u32 [#allocation8], 4
      %s167 = int_to_ptr.vmem [resolvable:$true] %s166
      %s168 = sshll.u32 %s5, 4
      %s169 = int_to_ptr.hbm [resolvable:$true] %s168
      %174 = dma.vmem_to_hbm [thread:$0]  %s167, 256, %s169, [#allocation4], 128, 128, 8
    $region37: #{tpu_custom_call.1} parent=1 // pred_fallthru
      _
    // Predicated region
    $region38: #{tpu_custom_call.1} parent=1 // pred_check
      _
    $region39: #{tpu_custom_call.1} parent=1 // pred_check_branch
      %176 = sbr.rel (0) target = $region41
    $region40: #{tpu_custom_call.1} parent=1 // pred_region
      %178 = dma.done [#allocation4], 256
    $region41: #{tpu_custom_call.1} parent=1 // pred_fallthru
      _
    %179 = vsyncpa [#allocation3], 1
    %180 = vsyncpa [#allocation6], 1
    %181 = vsyncpa [#allocation4], 1

</llo_original>
